<compile_context>
chip_gen: v6e
topology: v6e:2x2x1
jax: 0.10.0
libtpu: 0.0.40
codegen_flags: <defaults>
</compile_context>

<pallas_src>
from functools import partial

import jax
import jax.numpy as jnp
from jax.experimental import pallas as pl
from jax.experimental.pallas import tpu as pltpu


_TILE_B = 512      # batch tile (multiple of 8 f32 sublanes); used once B > _TILE_B
_LANE = 128        # lane-dense output width


# ----------------------------------------------------------------------------
# Pallas kernel: fused 2-layer MLP  out = relu(x @ W1 + b1) @ W2 + b2
#   x_ref : (tile_b, D_in)   f32   (cast to bf16 for the MXU feed)
#   w1_ref: (D_in, H)        bf16
#   b1_ref: (1, H)           f32
#   w2_ref: (H, D_out_pad)   bf16  (D_out_pad is a multiple of 128)
#   b2_ref: (1, D_out_pad)   f32
#   o_ref : (tile_b, D_out_pad) f32
# ----------------------------------------------------------------------------
def _mlp_kernel(x_ref, w1_ref, b1_ref, w2_ref, b2_ref, o_ref):
    x = x_ref[...].astype(jnp.bfloat16)                    # bf16 MXU feed
    h = jnp.dot(x, w1_ref[...], preferred_element_type=jnp.float32)
    h = jnp.maximum(h + b1_ref[...], 0.0)                  # bias + ReLU in f32
    h = h.astype(jnp.bfloat16)                             # explicit bf16 MXU feed
    o = jnp.dot(h, w2_ref[...], preferred_element_type=jnp.float32)
    o_ref[...] = (o + b2_ref[...]).astype(o_ref.dtype)     # lane-dense store


def _mlp_forward(x, w1_t, b1, w2_t, b2):
    """x: (B, D_in) f32; w1_t: (D_in, H) bf16; b1: (1, H) f32;
    w2_t: (H, D_out_pad) bf16; b2: (1, D_out_pad) f32 -> (B, D_out_pad) f32."""
    B, D_in = x.shape
    H, D_out_pad = w2_t.shape

    if B > _TILE_B:
        tile_b = _TILE_B
        Bp = pl.cdiv(B, _TILE_B) * _TILE_B
        if Bp != B:
            x = jnp.pad(x, ((0, Bp - B), (0, 0)))
    else:
        tile_b = B
        Bp = B
    nb = Bp // tile_b

    out = pl.pallas_call(
        _mlp_kernel,
        out_shape=jax.ShapeDtypeStruct((Bp, D_out_pad), x.dtype),
        grid=(nb,),
        in_specs=[
            pl.BlockSpec((tile_b, D_in), lambda i: (i, 0)),     # pipelined activations
            pl.BlockSpec((D_in, H), lambda i: (0, 0)),          # weights resident
            pl.BlockSpec((1, H), lambda i: (0, 0)),
            pl.BlockSpec((H, D_out_pad), lambda i: (0, 0)),
            pl.BlockSpec((1, D_out_pad), lambda i: (0, 0)),
        ],
        out_specs=pl.BlockSpec((tile_b, D_out_pad), lambda i: (i, 0)),
        compiler_params=pltpu.CompilerParams(
            dimension_semantics=("parallel",),                  # megacore on v7x
        ),
    )(x, w1_t, b1, w2_t, b2)

    if Bp != B:
        out = out[:B]
    return out


@partial(jax.jit, static_argnames=("d_out",))
def _mlp_apply(x, w1_t, b1, w2_t, b2, *, d_out):
    y = _mlp_forward(x, w1_t, b1, w2_t, b2)
    return y[:, :d_out]                                         # drop lane padding


def _prep_params(params):
    """One-time layout glue (analogue of DependentModule.substitute_from_list):
    torch-layout (out,in) weights -> (in,out) bf16 MXU operands, (1,H) f32
    biases, output dim zero-padded up to a multiple of 128 lanes."""
    w1, b1, w2, b2 = (jnp.asarray(p) for p in params)
    d_out = w2.shape[0]
    pad = (-d_out) % _LANE
    w1_t = w1.T.astype(jnp.bfloat16)                                    # (in, hidden)
    b1_r = b1.reshape(1, -1).astype(jnp.float32)                        # (1, hidden)
    w2_t = jnp.pad(w2, ((0, pad), (0, 0))).T.astype(jnp.bfloat16)       # (hidden, out_pad)
    b2_r = jnp.pad(b2, (0, pad)).reshape(1, -1).astype(jnp.float32)     # (1, out_pad)
    return w1_t, b1_r, w2_t, b2_r


# ----------------------------------------------------------------------------
# ProtoModule equivalent
# ----------------------------------------------------------------------------
class ProtoModulePallas:
    """JAX/Pallas analogue of metann's ProtoModule wrapping a 2-layer MLP.

    self.params follow PyTorch nn.Linear convention:
      w1: (hidden, in_dim), b1: (hidden,), w2: (out_dim, hidden), b2: (out_dim,)
    """

    def __init__(self, in_dim, hidden, out_dim, key):
        k1, k2, k3, k4 = jax.random.split(key, 4)
        lim1 = 1.0 / jnp.sqrt(in_dim)
        lim2 = 1.0 / jnp.sqrt(hidden)
        self.params = [
            jax.random.uniform(k1, (hidden, in_dim), jnp.float32, -lim1, lim1),  # w1
            jax.random.uniform(k2, (hidden,), jnp.float32, -lim1, lim1),          # b1
            jax.random.uniform(k3, (out_dim, hidden), jnp.float32, -lim2, lim2),  # w2
            jax.random.uniform(k4, (out_dim,), jnp.float32, -lim2, lim2),          # b2
        ]
        self.out_dim = out_dim
        self.training = True
        # Layout glue cached once (not per forward call).
        self._prepped = _prep_params(self.params)

    # ProtoModule.forward -> delegates to wrapped module with its own params.
    def forward(self, x):
        return _mlp_apply(x, *self._prepped, d_out=self.out_dim)

    __call__ = forward

    # ProtoModule.functional(params, training) -> stateless callable with
    # substituted parameters.  Glue is done once at functional() setup; the
    # inner MLP has no dropout/BN so `training` does not change the math.
    def functional(self, params, training=None):
        training = self.training if training is None else training  # noqa: F841
        prepped = _prep_params(list(params))
        d_out = self.out_dim

        def stateless(x):
            return _mlp_apply(x, *prepped, d_out=d_out)

        return stateless

    def named_parameters(self):
        names = ["module.0.weight", "module.0.bias",
                 "module.2.weight", "module.2.bias"]
        return list(zip(names, self.params))


# ----------------------------------------------------------------------------
if __name__ == "__main__":
    key = jax.random.PRNGKey(0)
    k_param, k_x, k_big = jax.random.split(key, 3)

    B, D_IN, HIDDEN, D_OUT = 8, 32, 64, 16
    proto = ProtoModulePallas(D_IN, HIDDEN, D_OUT, k_param)

    x = jax.random.normal(k_x, (B, D_IN), jnp.float32)

    # Pure-JAX f32 reference of the same forward (torch-layout weights).
    def ref(params, xx):
        w1, b1, w2, b2 = params
        h = jnp.maximum(xx @ w1.T + b1, 0.0)
        return h @ w2.T + b2

    # Stateful forward (ProtoModule.forward)
    y = jax.block_until_ready(proto(x))
    assert y.shape == (B, D_OUT) and y.dtype == jnp.float32
    assert jnp.allclose(y, ref(proto.params, x), atol=3e-2, rtol=3e-2)

    # Stateless functional call with substituted params (ProtoModule.functional)
    new_params = [p * 0.5 for p in proto.params]
    y_fn = jax.block_until_ready(proto.functional(new_params, training=True)(x))
    assert jnp.allclose(y_fn, ref(new_params, x), atol=3e-2, rtol=3e-2)

    # Exercise the pipelined batch grid (2 tiles of 512 rows, parallel axis).
    x_big = jax.random.normal(k_big, (1024, D_IN), jnp.float32)
    y_big = jax.block_until_ready(proto(x_big))
    assert y_big.shape == (1024, D_OUT)
    assert jnp.allclose(y_big, ref(proto.params, x_big), atol=3e-2, rtol=3e-2)

    print("KERNEL_OK")
</pallas_src>

<mosaic_0001>
module attributes {stable_mosaic.version = 11 : i64} {
  func.func @_mlp_kernel(%arg0: i32, %arg1: memref<8x32xf32, #tpu.memory_space<vmem>>, %arg2: memref<32x64xbf16, #tpu.memory_space<vmem>>, %arg3: memref<1x64xf32, #tpu.memory_space<vmem>>, %arg4: memref<64x128xbf16, #tpu.memory_space<vmem>>, %arg5: memref<1x128xf32, #tpu.memory_space<vmem>>, %arg6: memref<8x128xf32, #tpu.memory_space<vmem>>) attributes {dimension_semantics = [#tpu.dimension_semantics<parallel>], iteration_bounds = array<i64: 1>, scalar_prefetch = 0 : i64, scratch_operands = 0 : i64, tpu.core_type = #tpu.core_type<tc>, window_params = [{transform_indices = @transform_0, window_bounds = array<i64: 8, 32>}, {pipeline_mode = #tpu.pipeline_mode<synchronous>, transform_indices = @transform_1, window_bounds = array<i64: 32, 64>}, {pipeline_mode = #tpu.pipeline_mode<synchronous>, transform_indices = @transform_2, window_bounds = array<i64: 1, 64>}, {pipeline_mode = #tpu.pipeline_mode<synchronous>, transform_indices = @transform_3, window_bounds = array<i64: 64, 128>}, {pipeline_mode = #tpu.pipeline_mode<synchronous>, transform_indices = @transform_4, window_bounds = array<i64: 1, 128>}, {transform_indices = @transform_5, window_bounds = array<i64: 8, 128>}]} {
    %c0 = arith.constant 0 : index
    %c0_0 = arith.constant 0 : index
    %0 = vector.load %arg1[%c0, %c0_0] : memref<8x32xf32, #tpu.memory_space<vmem>>, vector<8x32xf32>
    %1 = arith.truncf %0 : vector<8x32xf32> to vector<8x32xbf16>
    %c0_1 = arith.constant 0 : index
    %c0_2 = arith.constant 0 : index
    %2 = vector.load %arg2[%c0_1, %c0_2] : memref<32x64xbf16, #tpu.memory_space<vmem>>, vector<32x64xbf16>
    %cst = arith.constant dense<0.000000e+00> : vector<8x64xf32>
    %3 = tpu.matmul %1, %2, %cst {dimension_numbers = #tpu.dot_dimension_numbers<[1], [0], [0], [1], [0, 0, 1, 1], [], []>} : vector<8x32xbf16>, vector<32x64xbf16>, vector<8x64xf32> -> vector<8x64xf32>
    %c0_3 = arith.constant 0 : index
    %c0_4 = arith.constant 0 : index
    %4 = vector.load %arg3[%c0_3, %c0_4] : memref<1x64xf32, #tpu.memory_space<vmem>>, vector<1x64xf32>
    %5 = vector.broadcast %4 : vector<1x64xf32> to vector<8x64xf32>
    %6 = arith.addf %3, %5 : vector<8x64xf32>
    %cst_5 = arith.constant 0.000000e+00 : f32
    %7 = vector.broadcast %cst_5 : f32 to vector<8x64xf32>
    %8 = arith.maximumf %6, %7 : vector<8x64xf32>
    %9 = arith.truncf %8 : vector<8x64xf32> to vector<8x64xbf16>
    %c0_6 = arith.constant 0 : index
    %c0_7 = arith.constant 0 : index
    %10 = vector.load %arg4[%c0_6, %c0_7] : memref<64x128xbf16, #tpu.memory_space<vmem>>, vector<64x128xbf16>
    %cst_8 = arith.constant dense<0.000000e+00> : vector<8x128xf32>
    %11 = tpu.matmul %9, %10, %cst_8 {dimension_numbers = #tpu.dot_dimension_numbers<[1], [0], [0], [1], [0, 0, 1, 1], [], []>} : vector<8x64xbf16>, vector<64x128xbf16>, vector<8x128xf32> -> vector<8x128xf32>
    %c0_9 = arith.constant 0 : index
    %c0_10 = arith.constant 0 : index
    %12 = vector.load %arg5[%c0_9, %c0_10] : memref<1x128xf32, #tpu.memory_space<vmem>>, vector<1x128xf32>
    %13 = vector.broadcast %12 : vector<1x128xf32> to vector<8x128xf32>
    %14 = arith.addf %11, %13 : vector<8x128xf32>
    %c0_11 = arith.constant 0 : index
    %c0_12 = arith.constant 0 : index
    %15 = vector.load %arg6[%c0_11, %c0_12] : memref<8x128xf32, #tpu.memory_space<vmem>>, vector<8x128xf32>
    tpu.vector_store %arg6[%c0_11, %c0_12], %14 {strides = array<i32>} : memref<8x128xf32, #tpu.memory_space<vmem>>, vector<8x128xf32>,
    return
  }
  func.func @transform_0(%arg0: i32) -> (i32, i32) {
    %c0_i32 = arith.constant 0 : i32
    %c0_i32_0 = arith.constant 0 : i32
    return %arg0, %c0_i32 : i32, i32
  }
  func.func @transform_1(%arg0: i32) -> (i32, i32) {
    %c0_i32 = arith.constant 0 : i32
    %c0_i32_0 = arith.constant 0 : i32
    %c0_i32_1 = arith.constant 0 : i32
    return %c0_i32, %c0_i32_0 : i32, i32
  }
  func.func @transform_2(%arg0: i32) -> (i32, i32) {
    %c0_i32 = arith.constant 0 : i32
    %c0_i32_0 = arith.constant 0 : i32
    %c0_i32_1 = arith.constant 0 : i32
    return %c0_i32, %c0_i32_0 : i32, i32
  }
  func.func @transform_3(%arg0: i32) -> (i32, i32) {
    %c0_i32 = arith.constant 0 : i32
    %c0_i32_0 = arith.constant 0 : i32
    %c0_i32_1 = arith.constant 0 : i32
    return %c0_i32, %c0_i32_0 : i32, i32
  }
  func.func @transform_4(%arg0: i32) -> (i32, i32) {
    %c0_i32 = arith.constant 0 : i32
    %c0_i32_0 = arith.constant 0 : i32
    %c0_i32_1 = arith.constant 0 : i32
    return %c0_i32, %c0_i32_0 : i32, i32
  }
  func.func @transform_5(%arg0: i32) -> (i32, i32) {
    %c0_i32 = arith.constant 0 : i32
    %c0_i32_0 = arith.constant 0 : i32
    return %arg0, %c0_i32 : i32, i32
  }
}

</mosaic_0001>

<llo_original>
// kernel: _mlp_apply.1
$region0: #{_mlp_apply.1}
  #allocation0 [shape = 'u32[]', space=smem, size = 0x4, offset = 0x4, fixed_abs, tag = 'smem constant byte address 0x4 - core index']
  #allocation1 [shape = 'u32[144,128]{1,0:T(1,128)}', space=vmem, size = 0x12000, scoped, tag = 'internal scratch']
  %s0 = inlined_call_operand.hbm [shape: f32[8,32], index: 0, kind: input, shape index: {}]
  %s1 = inlined_call_operand.hbm [shape: bf16[32,64], index: 1, kind: input, shape index: {}]
  %s2 = inlined_call_operand.vmem [shape: f32[1,64], index: 2, kind: input, shape index: {}]
  %s3 = inlined_call_operand.hbm [shape: bf16[64,128], index: 3, kind: input, shape index: {}]
  %s4 = inlined_call_operand.vmem [shape: f32[1,128], index: 4, kind: input, shape index: {}]
  %s5 = inlined_call_operand.hbm [shape: f32[8,128], index: 5, kind: output, shape index: {}]
  %s6 = sld [smem:[#allocation0]]
  $region42: #{_mlp_apply.1} parent=0
    _
  %s8 = ssub.s32 1, %s6
  %s9 = scalar_select 0, %s8, %s6
  $region1: #{_mlp_apply.1} parent=0
    #allocation2 [shape = 'u8[4096]{0}', space=vmem, size = 0x1000, scoped, tag = 'input window, operand 0, single buffered']
    #allocation3 [shape = 's32[1]{0}', space=sflag, size = 0x4, scoped, tag = 'scoped memory for _mlp_apply.1']
    #allocation4 [shape = 's32[1]{0}', space=sflag, size = 0x4, scoped, tag = 'scoped memory for _mlp_apply.1']
    #allocation5 [shape = 'u8[8192]{0}', space=vmem, size = 0x2000, scoped, tag = 'input window, operand 1, single buffered']
    #allocation6 [shape = 's32[1]{0}', space=sflag, size = 0x4, scoped, tag = 'scoped memory for _mlp_apply.1']
    #allocation7 [shape = 'u8[16384]{0}', space=vmem, size = 0x4000, scoped, tag = 'input window, operand 3, single buffered']
    #allocation8 [shape = 'u8[4096]{0}', space=vmem, size = 0x1000, scoped, tag = 'output window, operand 0, single buffered']
    %10 = vsyncpa [#allocation3], 0
    %11 = vsyncpa [#allocation6], 0
    %12 = vsyncpa [#allocation4], 0
    // Predicated region
    $region2: #{_mlp_apply.1} parent=1 // pred_check
      _
    $region3: #{_mlp_apply.1} parent=1 // pred_check_branch
      %14 = sbr.rel (0) target = $region5
    $region4: #{_mlp_apply.1} parent=1 // pred_region
      %s16 = ssub.s32 128, 128
      %17 = vsyncadd [#allocation3], %s16
      %s19 = sshll.u32 [#allocation2], 4
      %s20 = int_to_ptr.vmem [resolvable:$true] %s19
      %22 = dma.hbm_to_vmem [thread:$0]  %s0, 128, %s20, [#allocation3]
    $region5: #{_mlp_apply.1} parent=1 // pred_fallthru
      _
    // Predicated region
    $region6: #{_mlp_apply.1} parent=1 // pred_check
      _
    $region7: #{_mlp_apply.1} parent=1 // pred_check_branch
      %24 = sbr.rel (0) target = $region9
    $region8: #{_mlp_apply.1} parent=1 // pred_region
      %s26 = ssub.s32 256, 256
      %27 = vsyncadd [#allocation6], %s26
      %s28 = sshll.u32 [#allocation5], 4
      %s29 = int_to_ptr.vmem [resolvable:$true] %s28
      %34 = dma.hbm_to_vmem [thread:$0]  %s1, 256, %s29, [#allocation6], 64, 64, 4
    $region9: #{_mlp_apply.1} parent=1 // pred_fallthru
      _
    // Predicated region
    $region10: #{_mlp_apply.1} parent=1 // pred_check
      _
    $region11: #{_mlp_apply.1} parent=1 // pred_check_branch
      %36 = sbr.rel (0) target = $region13
    $region12: #{_mlp_apply.1} parent=1 // pred_region
      _
    $region13: #{_mlp_apply.1} parent=1 // pred_fallthru
      _
    // Predicated region
    $region14: #{_mlp_apply.1} parent=1 // pred_check
      _
    $region15: #{_mlp_apply.1} parent=1 // pred_check_branch
      %38 = sbr.rel (0) target = $region17
    $region16: #{_mlp_apply.1} parent=1 // pred_region
      %s40 = ssub.s32 512, 512
      %41 = vsyncadd [#allocation6], %s40
      %s42 = sshll.u32 [#allocation7], 4
      %s43 = int_to_ptr.vmem [resolvable:$true] %s42
      %48 = dma.hbm_to_vmem [thread:$0]  %s3, 512, %s43, [#allocation6], 64, 64, 4
    $region17: #{_mlp_apply.1} parent=1 // pred_fallthru
      _
    // Predicated region
    $region18: #{_mlp_apply.1} parent=1 // pred_check
      _
    $region19: #{_mlp_apply.1} parent=1 // pred_check_branch
      %50 = sbr.rel (0) target = $region21
    $region20: #{_mlp_apply.1} parent=1 // pred_region
      _
    $region21: #{_mlp_apply.1} parent=1 // pred_fallthru
      _
    // Predicated region
    $region22: #{_mlp_apply.1} parent=1 // pred_check
      _
    $region23: #{_mlp_apply.1} parent=1 // pred_check_branch
      %52 = sbr.rel (0) target = $region25
    $region24: #{_mlp_apply.1} parent=1 // pred_region
      %53 = dma.done [#allocation3], 128
    $region25: #{_mlp_apply.1} parent=1 // pred_fallthru
      _
    // Predicated region
    $region26: #{_mlp_apply.1} parent=1 // pred_check
      _
    $region27: #{_mlp_apply.1} parent=1 // pred_check_branch
      %55 = sbr.rel (0) target = $region29
    $region28: #{_mlp_apply.1} parent=1 // pred_region
      %56 = dma.done [#allocation6], 256
    $region29: #{_mlp_apply.1} parent=1 // pred_fallthru
      _
    // Predicated region
    $region30: #{_mlp_apply.1} parent=1 // pred_check
      _
    $region31: #{_mlp_apply.1} parent=1 // pred_check_branch
      %58 = sbr.rel (0) target = $region33
    $region32: #{_mlp_apply.1} parent=1 // pred_region
      %59 = dma.done [#allocation6], 512
    $region33: #{_mlp_apply.1} parent=1 // pred_fallthru
      _
    %v61 = vld [vmem:[#allocation2] sm:$0xff]
    %v62 = vpack.c.bf16 %v61, %v61
    %v63 = vld [vmem:[#allocation5] sm:$0xf]
    %v64 = vld [vmem:[#allocation5 + $0x4] sm:$0xf]
    %v65 = vld [vmem:[#allocation5 + $0x8] sm:$0xf]
    %v66 = vld [vmem:[#allocation5 + $0xc] sm:$0xf]
    %v67 = vld [vmem:[%s2] sm:$0x1]
    %v69 = vlaneseq
    %v70 = vshrl.u32 %v69, 7
    %v71 = vsub.s32 0, %v70
    %v72 = vrot.slane %v67, %v71
    %v78 = vunpack.c.l.b16 %v63
    %v79 = vunpack.c.l.b16 %v64
    %v80 = vunpack.c.l.b16 %v65
    %v81 = vunpack.c.l.b16 %v66
    %v82 = vpack.c.b16 %v79, %v78
    %v83 = vpack.c.b16 %v81, %v80
    %vm86 = vcmask 261120
    %v88 = vsel %vm86, %v62, 0
    %90 = vmatprep.subr.bf16.mxu0 0
    %91 = vmatpush1.bf16.msra.mxu0 0
    %92 = vmatprep.subr.bf16.mxu0 0
    %93 = vmatpush1.bf16.msra.mxu0 0
    %94 = vmatprep.subr.bf16.mxu0 0
    %95 = vmatpush1.bf16.msra.mxu0 0
    %96 = vmatprep.subr.bf16.mxu0 0
    %97 = vmatpush1.bf16.msra.mxu0 0
    %98 = vmatprep.subr.bf16.mxu0 0
    %99 = vmatpush1.bf16.msra.mxu0 0
    %100 = vmatprep.subr.bf16.mxu0 0
    %101 = vmatpush1.bf16.msra.mxu0 0
    %102 = vmatprep.subr.bf16.mxu0 0
    %103 = vmatpush1.bf16.msra.mxu0 %v83
    %104 = vmatprep.subr.bf16.mxu0 0
    %105 = vmatpush1.bf16.msra.mxu0 %v82
    %106 = vmatprep.subr.bf16.mxu0 0
    %107 = vmatpush2.bf16.msra.mxu0 0
    %108 = vmatprep.subr.bf16.mxu0 0
    %109 = vmatpush2.bf16.msra.mxu0 0
    %110 = vmatprep.subr.bf16.mxu0 0
    %111 = vmatpush2.bf16.msra.mxu0 0
    %112 = vmatprep.subr.bf16.mxu0 0
    %113 = vmatpush2.bf16.msra.mxu0 0
    %114 = vmatprep.subr.bf16.mxu0 0
    %115 = vmatpush2.bf16.msra.mxu0 0
    %116 = vmatprep.subr.bf16.mxu0 0
    %117 = vmatpush2.bf16.msra.mxu0 0
    %118 = vmatprep.subr.bf16.mxu0 0
    %119 = vmatpush2.bf16.msra.mxu0 0
    %120 = vmatprep.subr.bf16.mxu0 0
    %121 = vmatpush2.bf16.msra.mxu0 0
    %122 = vmatprep.mubr.bf16.mxu0 0
    %123 = vmatmul.mubr.bf16.gmra.mxu0 %v88
    %v124 = vpop.f32.mrf.mxu0
    %v125 = vadd.f32 %v72, %v124
    %v126 = vpop.f32.mrf.mxu0
    %v127 = vpop.f32.mrf.mxu0
    %v128 = vpop.f32.mrf.mxu0
    %129 = vdwg.mxu0
    %v130 = vmax.f32 %v125, 0.0
    %v131 = vpack.c.bf16 %v130, %v130
    %v132 = vld [vmem:[#allocation7] sm:$0xf]
    %v133 = vld [vmem:[#allocation7 + $0x4] sm:$0xf]
    %v134 = vld [vmem:[#allocation7 + $0x8] sm:$0xf]
    %v135 = vld [vmem:[#allocation7 + $0xc] sm:$0xf]
    %v136 = vld [vmem:[#allocation7 + $0x10] sm:$0xf]
    %v137 = vld [vmem:[#allocation7 + $0x14] sm:$0xf]
    %v138 = vld [vmem:[#allocation7 + $0x18] sm:$0xf]
    %v139 = vld [vmem:[#allocation7 + $0x1c] sm:$0xf]
    %v140 = vld [vmem:[%s4] sm:$0x1]
    %v142 = vlaneseq
    %v143 = vshrl.u32 %v142, 7
    %v144 = vsub.s32 0, %v143
    %v145 = vrot.slane %v140, %v144
    %v155 = vunpack.c.l.b16 %v132
    %v156 = vunpack.c.l.b16 %v133
    %v157 = vunpack.c.l.b16 %v134
    %v158 = vunpack.c.l.b16 %v135
    %v159 = vunpack.c.l.b16 %v136
    %v160 = vunpack.c.l.b16 %v137
    %v161 = vunpack.c.l.b16 %v138
    %v162 = vunpack.c.l.b16 %v139
    %v163 = vpack.c.b16 %v156, %v155
    %v164 = vpack.c.b16 %v158, %v157
    %v165 = vpack.c.b16 %v160, %v159
    %v166 = vpack.c.b16 %v162, %v161
    %vm171 = vcmask 523264
    %v173 = vsel %vm171, %v131, 0
    %175 = vmatprep.subr.bf16.mxu0 0
    %176 = vmatpush1.bf16.msra.mxu0 0
    %177 = vmatprep.subr.bf16.mxu0 0
    %178 = vmatpush1.bf16.msra.mxu0 0
    %179 = vmatprep.subr.bf16.mxu0 0
    %180 = vmatpush1.bf16.msra.mxu0 0
    %181 = vmatprep.subr.bf16.mxu0 0
    %182 = vmatpush1.bf16.msra.mxu0 0
    %183 = vmatprep.subr.bf16.mxu0 0
    %184 = vmatpush1.bf16.msra.mxu0 %v166
    %185 = vmatprep.subr.bf16.mxu0 0
    %186 = vmatpush1.bf16.msra.mxu0 %v165
    %187 = vmatprep.subr.bf16.mxu0 0
    %188 = vmatpush1.bf16.msra.mxu0 %v164
    %189 = vmatprep.subr.bf16.mxu0 0
    %190 = vmatpush1.bf16.msra.mxu0 %v163
    %191 = vmatprep.subr.bf16.mxu0 0
    %192 = vmatpush2.bf16.msra.mxu0 0
    %193 = vmatprep.subr.bf16.mxu0 0
    %194 = vmatpush2.bf16.msra.mxu0 0
    %195 = vmatprep.subr.bf16.mxu0 0
    %196 = vmatpush2.bf16.msra.mxu0 0
    %197 = vmatprep.subr.bf16.mxu0 0
    %198 = vmatpush2.bf16.msra.mxu0 0
    %199 = vmatprep.subr.bf16.mxu0 0
    %200 = vmatpush2.bf16.msra.mxu0 0
    %201 = vmatprep.subr.bf16.mxu0 0
    %202 = vmatpush2.bf16.msra.mxu0 0
    %203 = vmatprep.subr.bf16.mxu0 0
    %204 = vmatpush2.bf16.msra.mxu0 0
    %205 = vmatprep.subr.bf16.mxu0 0
    %206 = vmatpush2.bf16.msra.mxu0 0
    %207 = vmatprep.mubr.bf16.mxu0 0
    %208 = vmatmul.mubr.bf16.gmra.mxu0 %v173
    %v209 = vpop.f32.mrf.mxu0
    %v210 = vadd.f32 %v145, %v209
    %v211 = vpop.f32.mrf.mxu0
    %v212 = vpop.f32.mrf.mxu0
    %v213 = vpop.f32.mrf.mxu0
    %214 = vdwg.mxu0
    %215 = vst [vmem:[#allocation8] sm:$0xff] %v210
    // Predicated region
    $region34: #{_mlp_apply.1} parent=1 // pred_check
      _
    $region35: #{_mlp_apply.1} parent=1 // pred_check_branch
      %217 = sbr.rel (0) target = $region37
    $region36: #{_mlp_apply.1} parent=1 // pred_region
      %s219 = ssub.s32 128, 128
      %220 = vsyncadd [#allocation4], %s219
      %s222 = sshll.u32 [#allocation8], 4
      %s223 = int_to_ptr.vmem [resolvable:$true] %s222
      %225 = dma.vmem_to_hbm [thread:$0]  %s223, 128, %s5, [#allocation4]
    $region37: #{_mlp_apply.1} parent=1 // pred_fallthru
      _
    // Predicated region
    $region38: #{_mlp_apply.1} parent=1 // pred_check
      _
    $region39: #{_mlp_apply.1} parent=1 // pred_check_branch
      %227 = sbr.rel (0) target = $region41
    $region40: #{_mlp_apply.1} parent=1 // pred_region
      %228 = dma.done [#allocation4], 128
    $region41: #{_mlp_apply.1} parent=1 // pred_fallthru
      _
    %229 = vsyncpa [#allocation3], 1
    %230 = vsyncpa [#allocation6], 1
    %231 = vsyncpa [#allocation4], 1

</llo_original>
